<compile_context>
chip_gen: v7x
topology: tpu7x:2x2x1
jax: 0.10.0
libtpu: 0.0.40
codegen_flags: <defaults>
</compile_context>

<pallas_src>
import functools
import math

import jax
import jax.numpy as jnp
from jax.experimental import pallas as pl
from jax.experimental.pallas import tpu as pltpu


_INV_SQRT2 = 0.7071067811865476


def _erf(x):
    # Abramowitz & Stegun 7.1.26 rational approximation, |abs err| <= 1.5e-7
    # (f32 round-off level).  Uses only VPU mul/add/div and one EUP exp, all of
    # which lower cleanly in Mosaic.
    a1 = 0.254829592
    a2 = -0.284496736
    a3 = 1.421413741
    a4 = -1.453152027
    a5 = 1.061405429
    p = 0.3275911
    ax = jnp.abs(x)
    t = 1.0 / (1.0 + p * ax)
    poly = ((((a5 * t + a4) * t + a3) * t + a2) * t + a1) * t
    y = 1.0 - poly * jnp.exp(-ax * ax)
    return jnp.where(x >= 0.0, y, -y)


def _gelu_exact(x):
    # Matches torch.nn.GELU() (erf formulation, not the tanh approximation).
    return 0.5 * x * (1.0 + _erf(x * _INV_SQRT2))


def _project_readout_kernel(x_ref, wt1_ref, wt2_ref, b_ref, o_ref, *,
                            start_index: int, ts: int):
    # x_ref  : (1, S, D)   full per-batch token slab (resident across token tiles)
    # wt1_ref: (D, D)      W.T[:D]  -> applied to the kept tokens
    # wt2_ref: (D, D)      W.T[D:]  -> applied to the readout (cls) token
    # b_ref  : (1, D)
    # o_ref  : (1, ts, D)
    j = pl.program_id(1)

    tokens = x_ref[0, pl.ds(start_index + j * ts, ts), :]        # (ts, D)
    readout = x_ref[0, 0:1, :]                                   # (1, D)

    # Main MXU matmul for this token tile.
    acc = jnp.dot(tokens, wt1_ref[...], preferred_element_type=jnp.float32)
    # Readout contribution: tiny (1, D) @ (D, D) matmul, broadcast over the tile.
    r_proj = jnp.dot(readout, wt2_ref[...], preferred_element_type=jnp.float32)
    acc = acc + r_proj + b_ref[...].astype(jnp.float32)

    o_ref[0, :, :] = _gelu_exact(acc).astype(o_ref.dtype)


def _pick_token_tile(s_out: int, max_tile: int) -> int:
    """Largest sublane-aligned tile that divides S_out; falls back to full axis."""
    if s_out <= max_tile:
        return s_out
    for ts in range(max_tile, 7, -1):
        if s_out % ts == 0 and ts % 8 == 0:
            return ts
    return s_out  # full token axis is always a legal block shape


def project_readout(x: jax.Array, w: jax.Array, b: jax.Array, *,
                    start_index: int = 1, max_token_tile: int = 256) -> jax.Array:
    """Pallas implementation of ProjectReadout.forward.

    x: (B, S, D) tokens, w: (D, 2D) nn.Linear weight, b: (D,) bias
    -> (B, S - start_index, D)
    """
    B, S, D = x.shape
    assert w.shape == (D, 2 * D), w.shape
    assert b.shape == (D,), b.shape
    assert 1 <= start_index < S
    S_out = S - start_index

    # Split the linear weight so cat([tokens, readout], -1) @ W.T is computed as
    # tokens @ W.T[:D] + readout @ W.T[D:]  (no concat materialized anywhere).
    wt = jnp.transpose(w)            # (2D, D)
    wt1 = wt[:D]                     # (D, D)
    wt2 = wt[D:]                     # (D, D)
    b2 = b.reshape(1, D)

    ts = _pick_token_tile(S_out, max_token_tile)
    n_tiles = S_out // ts
    grid = (B, n_tiles)

    kernel = functools.partial(_project_readout_kernel,
                               start_index=start_index, ts=ts)

    itemsize = jnp.dtype(x.dtype).itemsize
    cost = pl.CostEstimate(
        flops=2 * B * S_out * (2 * D) * D,
        transcendentals=B * S_out * D,
        bytes_accessed=(B * S * D + 2 * D * D + D + B * S_out * D) * itemsize,
    )

    return pl.pallas_call(
        kernel,
        out_shape=jax.ShapeDtypeStruct((B, S_out, D), x.dtype),
        grid_spec=pltpu.PrefetchScalarGridSpec(
            num_scalar_prefetch=0,
            grid=grid,
            in_specs=[
                # Per-batch token slab; constant index along the token-tile axis
                # -> fetched once per batch element, no re-DMA per tile.
                pl.BlockSpec((1, S, D), lambda bi, ji: (bi, 0, 0)),
                # Weights / bias: constant index map -> resident across the grid.
                pl.BlockSpec((D, D), lambda bi, ji: (0, 0)),
                pl.BlockSpec((D, D), lambda bi, ji: (0, 0)),
                pl.BlockSpec((1, D), lambda bi, ji: (0, 0)),
            ],
            out_specs=pl.BlockSpec((1, ts, D), lambda bi, ji: (bi, ji, 0)),
        ),
        compiler_params=pltpu.CompilerParams(
            dimension_semantics=("parallel", "parallel"),
        ),
        cost_estimate=cost,
    )(x, wt1, wt2, b2)


def _reference(x, w, b, start_index=1):
    """Pure-JAX reference, faithful to the PyTorch module."""
    tokens = x[:, start_index:]
    readout = jnp.broadcast_to(x[:, 0][:, None, :], tokens.shape)
    feats = jnp.concatenate([tokens, readout], axis=-1)
    h = jnp.dot(feats, w.T, precision=jax.lax.Precision.HIGHEST) + b
    return jax.nn.gelu(h, approximate=False)


if __name__ == "__main__":
    key = jax.random.PRNGKey(0)
    kx, kw, kb = jax.random.split(key, 3)

    # Small ViT-like token tensor: batch=2, 1 cls token + 8 patch tokens, hidden=32.
    B, S, D = 2, 9, 32
    x = jax.random.normal(kx, (B, S, D), dtype=jnp.float32)
    w = jax.random.normal(kw, (D, 2 * D), dtype=jnp.float32) / math.sqrt(2 * D)
    b = 0.5 * jax.random.normal(kb, (D,), dtype=jnp.float32)

    out = jax.block_until_ready(project_readout(x, w, b, start_index=1))
    ref = _reference(x, w, b, start_index=1)
    assert out.shape == (B, S - 1, D), out.shape
    # Tolerance covers MXU f32 pass-count differences vs. the HIGHEST-precision
    # XLA reference; semantic bugs (missing bias / readout / swapped weights)
    # produce O(0.1-1) errors and are still caught.
    assert jnp.allclose(out, ref, atol=2e-2, rtol=2e-2), (
        "mismatch vs reference, max abs err = "
        + str(float(jnp.max(jnp.abs(out - ref)))))

    # start_index=2 path (readout is still token 0; tokens 2: are kept).
    out2 = jax.block_until_ready(project_readout(x, w, b, start_index=2))
    ref2 = _reference(x, w, b, start_index=2)
    assert out2.shape == (B, S - 2, D), out2.shape
    assert jnp.allclose(out2, ref2, atol=2e-2, rtol=2e-2), "mismatch (start_index=2)"

    print("KERNEL_OK")
</pallas_src>

<mosaic_0001>
module attributes {stable_mosaic.version = 11 : i64} {
  func.func @_project_readout_kernel(%arg0: i32, %arg1: i32, %arg2: memref<1x9x32xf32, #tpu.memory_space<vmem>>, %arg3: memref<32x32xf32, #tpu.memory_space<vmem>>, %arg4: memref<32x32xf32, #tpu.memory_space<vmem>>, %arg5: memref<1x32xf32, #tpu.memory_space<vmem>>, %arg6: memref<1x8x32xf32, #tpu.memory_space<vmem>>) attributes {dimension_semantics = [#tpu.dimension_semantics<parallel>, #tpu.dimension_semantics<parallel>], iteration_bounds = array<i64: 2, 1>, scalar_prefetch = 0 : i64, scratch_operands = 0 : i64, tpu.core_type = #tpu.core_type<tc>, window_params = [{transform_indices = @transform_0, window_bounds = array<i64: 1, 9, 32>}, {pipeline_mode = #tpu.pipeline_mode<synchronous>, transform_indices = @transform_1, window_bounds = array<i64: 32, 32>}, {pipeline_mode = #tpu.pipeline_mode<synchronous>, transform_indices = @transform_2, window_bounds = array<i64: 32, 32>}, {pipeline_mode = #tpu.pipeline_mode<synchronous>, transform_indices = @transform_3, window_bounds = array<i64: 1, 32>}, {transform_indices = @transform_4, window_bounds = array<i64: 1, 8, 32>}]} {
    %c8_i32 = arith.constant 8 : i32
    %0 = arith.muli %arg1, %c8_i32 : i32
    %c1_i32 = arith.constant 1 : i32
    %1 = arith.addi %c1_i32, %0 : i32
    %c0 = arith.constant 0 : index
    %2 = arith.index_cast %1 : i32 to index
    %c0_0 = arith.constant 0 : index
    %3 = vector.load %arg2[%c0, %2, %c0_0] : memref<1x9x32xf32, #tpu.memory_space<vmem>>, vector<1x8x32xf32>
    %4 = vector.shape_cast %3 : vector<1x8x32xf32> to vector<8x32xf32>
    %c0_1 = arith.constant 0 : index
    %c0_2 = arith.constant 0 : index
    %c0_3 = arith.constant 0 : index
    %5 = vector.load %arg2[%c0_1, %c0_2, %c0_3] : memref<1x9x32xf32, #tpu.memory_space<vmem>>, vector<1x1x32xf32>
    %6 = vector.shape_cast %5 : vector<1x1x32xf32> to vector<1x32xf32>
    %c0_4 = arith.constant 0 : index
    %c0_5 = arith.constant 0 : index
    %7 = vector.load %arg3[%c0_4, %c0_5] : memref<32x32xf32, #tpu.memory_space<vmem>>, vector<32x32xf32>
    %cst = arith.constant dense<0.000000e+00> : vector<8x32xf32>
    %8 = tpu.matmul %4, %7, %cst {dimension_numbers = #tpu.dot_dimension_numbers<[1], [0], [0], [1], [0, 0, 1, 1], [], []>} : vector<8x32xf32>, vector<32x32xf32>, vector<8x32xf32> -> vector<8x32xf32>
    %c0_6 = arith.constant 0 : index
    %c0_7 = arith.constant 0 : index
    %9 = vector.load %arg4[%c0_6, %c0_7] : memref<32x32xf32, #tpu.memory_space<vmem>>, vector<32x32xf32>
    %cst_8 = arith.constant dense<0.000000e+00> : vector<1x32xf32>
    %10 = tpu.matmul %6, %9, %cst_8 {dimension_numbers = #tpu.dot_dimension_numbers<[1], [0], [0], [1], [0, 0, 1, 1], [], []>} : vector<1x32xf32>, vector<32x32xf32>, vector<1x32xf32> -> vector<1x32xf32>
    %11 = vector.broadcast %10 : vector<1x32xf32> to vector<8x32xf32>
    %12 = arith.addf %8, %11 : vector<8x32xf32>
    %c0_9 = arith.constant 0 : index
    %c0_10 = arith.constant 0 : index
    %13 = vector.load %arg5[%c0_9, %c0_10] : memref<1x32xf32, #tpu.memory_space<vmem>>, vector<1x32xf32>
    %14 = vector.broadcast %13 : vector<1x32xf32> to vector<8x32xf32>
    %15 = arith.addf %12, %14 : vector<8x32xf32>
    %cst_11 = arith.constant 5.000000e-01 : f32
    %16 = vector.broadcast %cst_11 : f32 to vector<8x32xf32>
    %17 = arith.mulf %16, %15 : vector<8x32xf32>
    %cst_12 = arith.constant 0.707106769 : f32
    %18 = vector.broadcast %cst_12 : f32 to vector<8x32xf32>
    %19 = arith.mulf %15, %18 : vector<8x32xf32>
    %20 = math.absf %19 : vector<8x32xf32>
    %cst_13 = arith.constant 0.327591091 : f32
    %21 = vector.broadcast %cst_13 : f32 to vector<8x32xf32>
    %22 = arith.mulf %21, %20 : vector<8x32xf32>
    %cst_14 = arith.constant 1.000000e+00 : f32
    %23 = vector.broadcast %cst_14 : f32 to vector<8x32xf32>
    %24 = arith.addf %23, %22 : vector<8x32xf32>
    %cst_15 = arith.constant 1.000000e+00 : f32
    %25 = vector.broadcast %cst_15 : f32 to vector<8x32xf32>
    %26 = arith.divf %25, %24 : vector<8x32xf32>
    %cst_16 = arith.constant 1.06140542 : f32
    %27 = vector.broadcast %cst_16 : f32 to vector<8x32xf32>
    %28 = arith.mulf %27, %26 : vector<8x32xf32>
    %cst_17 = arith.constant -1.45315206 : f32
    %29 = vector.broadcast %cst_17 : f32 to vector<8x32xf32>
    %30 = arith.addf %28, %29 : vector<8x32xf32>
    %31 = arith.mulf %30, %26 : vector<8x32xf32>
    %cst_18 = arith.constant 1.42141378 : f32
    %32 = vector.broadcast %cst_18 : f32 to vector<8x32xf32>
    %33 = arith.addf %31, %32 : vector<8x32xf32>
    %34 = arith.mulf %33, %26 : vector<8x32xf32>
    %cst_19 = arith.constant -0.284496725 : f32
    %35 = vector.broadcast %cst_19 : f32 to vector<8x32xf32>
    %36 = arith.addf %34, %35 : vector<8x32xf32>
    %37 = arith.mulf %36, %26 : vector<8x32xf32>
    %cst_20 = arith.constant 0.254829586 : f32
    %38 = vector.broadcast %cst_20 : f32 to vector<8x32xf32>
    %39 = arith.addf %37, %38 : vector<8x32xf32>
    %40 = arith.mulf %39, %26 : vector<8x32xf32>
    %cst_21 = arith.constant 0.000000e+00 : f32
    %41 = vector.broadcast %cst_21 : f32 to vector<8x32xf32>
    %42 = arith.subf %41, %20 : vector<8x32xf32>
    %43 = arith.mulf %42, %20 : vector<8x32xf32>
    %44 = math.exp %43 : vector<8x32xf32>
    %45 = arith.mulf %40, %44 : vector<8x32xf32>
    %cst_22 = arith.constant 1.000000e+00 : f32
    %46 = vector.broadcast %cst_22 : f32 to vector<8x32xf32>
    %47 = arith.subf %46, %45 : vector<8x32xf32>
    %cst_23 = arith.constant 0.000000e+00 : f32
    %48 = vector.broadcast %cst_23 : f32 to vector<8x32xf32>
    %49 = arith.cmpf oge, %19, %48 : vector<8x32xf32>
    %cst_24 = arith.constant 0.000000e+00 : f32
    %50 = vector.broadcast %cst_24 : f32 to vector<8x32xf32>
    %51 = arith.subf %50, %47 : vector<8x32xf32>
    %52 = arith.select %49, %47, %51 : vector<8x32xi1>, vector<8x32xf32>
    %cst_25 = arith.constant 1.000000e+00 : f32
    %53 = vector.broadcast %cst_25 : f32 to vector<8x32xf32>
    %54 = arith.addf %53, %52 : vector<8x32xf32>
    %55 = arith.mulf %17, %54 : vector<8x32xf32>
    %c0_26 = arith.constant 0 : index
    %c0_27 = arith.constant 0 : index
    %c0_28 = arith.constant 0 : index
    %56 = vector.load %arg6[%c0_26, %c0_27, %c0_28] : memref<1x8x32xf32, #tpu.memory_space<vmem>>, vector<1x8x32xf32>
    %57 = vector.shape_cast %56 : vector<1x8x32xf32> to vector<8x32xf32>
    %58 = vector.shape_cast %55 : vector<8x32xf32> to vector<1x8x32xf32>
    tpu.vector_store %arg6[%c0_26, %c0_27, %c0_28], %58 {strides = array<i32>} : memref<1x8x32xf32, #tpu.memory_space<vmem>>, vector<1x8x32xf32>,
    return
  }
  func.func @transform_0(%arg0: i32, %arg1: i32) -> (i32, i32, i32) {
    %c0_i32 = arith.constant 0 : i32
    %c0_i32_0 = arith.constant 0 : i32
    %c0_i32_1 = arith.constant 0 : i32
    return %arg0, %c0_i32, %c0_i32_0 : i32, i32, i32
  }
  func.func @transform_1(%arg0: i32, %arg1: i32) -> (i32, i32) {
    %c0_i32 = arith.constant 0 : i32
    %c0_i32_0 = arith.constant 0 : i32
    %c0_i32_1 = arith.constant 0 : i32
    return %c0_i32, %c0_i32_0 : i32, i32
  }
  func.func @transform_2(%arg0: i32, %arg1: i32) -> (i32, i32) {
    %c0_i32 = arith.constant 0 : i32
    %c0_i32_0 = arith.constant 0 : i32
    %c0_i32_1 = arith.constant 0 : i32
    return %c0_i32, %c0_i32_0 : i32, i32
  }
  func.func @transform_3(%arg0: i32, %arg1: i32) -> (i32, i32) {
    %c0_i32 = arith.constant 0 : i32
    %c0_i32_0 = arith.constant 0 : i32
    %c0_i32_1 = arith.constant 0 : i32
    return %c0_i32, %c0_i32_0 : i32, i32
  }
  func.func @transform_4(%arg0: i32, %arg1: i32) -> (i32, i32, i32) {
    %c0_i32 = arith.constant 0 : i32
    %c0_i32_0 = arith.constant 0 : i32
    return %arg0, %arg1, %c0_i32 : i32, i32, i32
  }
}

</mosaic_0001>

<llo_original>
// kernel: tpu_custom_call.1
$region0: #{tpu_custom_call.1}
  #allocation0 [shape = 'u32[]', space=smem, size = 0x4, offset = 0x4, fixed_abs, tag = 'smem constant byte address 0x4 - core index']
  #allocation1 [shape = 'u32[144,128]{1,0:T(1,128)}', space=vmem, size = 0x12000, scoped, tag = 'internal scratch']
  %s0 = inlined_call_operand.vmem [shape: f32[2,9,32], index: 0, kind: input, shape index: {}]
  %s1 = inlined_call_operand.vmem [shape: f32[32,32], index: 1, kind: input, shape index: {}]
  %s2 = inlined_call_operand.hbm [shape: f32[32,32], index: 2, kind: input, shape index: {}]
  %s3 = inlined_call_operand.vmem [shape: f32[1,32], index: 3, kind: input, shape index: {}]
  %s4 = inlined_call_operand.hbm [shape: f32[2,8,32], index: 4, kind: output, shape index: {}]
  %s5 = sld [smem:[#allocation0]]
  $region53: #{tpu_custom_call.1} parent=0
    _
  %s7 = ssub.s32 1, %s5
  %s8 = scalar_select 0, %s7, %s5
  $region1: #{tpu_custom_call.1} parent=0
    #allocation2 [shape = 'u8[16384]{0}', space=vmem, size = 0x4000, scoped, tag = 'input window, operand 2, single buffered']
    #allocation3 [shape = 's32[2]{0}', space=sflag, size = 0x8, scoped, tag = 'scoped memory for tpu_custom_call.1']
    #allocation4 [shape = 's32[2]{0}', space=sflag, size = 0x8, scoped, tag = 'scoped memory for tpu_custom_call.1']
    #allocation5 [shape = 'u8[8192]{0}', space=vmem, size = 0x2000, scoped, tag = 'output window, operand 0']
    %9 = vsyncpa [#allocation3], 0
    %10 = vsyncpa [#allocation4], 0
    %s11 = scalar_lea.sflag [#allocation4], 1
    %12 = vsyncpa %s11, 0
    loop: start=0, step=1, limit=4
    $region2: #{tpu_custom_call.1} parent=1 // loop_pre_header
      _
    $region3: #{tpu_custom_call.1} parent=1 // loop_header
      %s14 = sphi 0, %s18
      %p15 = scmp.ge.s32.totalorder %s14, 4
      %s21 = sphi 0, %s33
      %s22 = sphi 0, %s29
      %s23 = sphi 0, %s21
      %s24 = sphi 0, %s22
      %s25 = sphi 0, %s23
      %s26 = sphi 0, %s24
      %s36 = sphi 0, %s38
      %s39 = sphi 0, %s36
      %s40 = sphi 0, %s39
      %s56 = sphi 0, %s40
      %s60 = sphi 0, %s60
      %s62 = sphi 0, %s60
      %s63 = sphi 0, %s62
      %s77 = sphi 0, %s63
      %s81 = sphi 0, %s81
      %s83 = sphi 0, %s81
      %s84 = sphi 0, %s83
      %s98 = sphi 0, %s84
      %s102 = sphi 0, %s102
      %s104 = sphi 0, %s102
      %s105 = sphi 0, %s104
      %s119 = sphi 0, %s105
      %s127 = sphi 0, %s129
      %s130 = sphi 0, %s127
      %s131 = sphi 0, %s130
      %s147 = sphi 0, %s131
    $region4: #{tpu_custom_call.1} parent=1 // loop_header_branch
      %17 = sbr.rel (%p15) target = $region8
    $region5: #{tpu_custom_call.1} parent=1 // loop_body
      %s19 = ssub.s32 %s14, 1
      %s20 = ssub.s32 %s14, 2
      %s27 = sadd.s32 1, %s22
      %p28 = scmp.ge.s32.totalorder %s27, 1
      %s29 = scalar_select %p28, 0, %s27
      %s30 = sadd.s32 1, %s21
      %s31 = scalar_select %p28, %s30, %s21
      %p32 = scmp.ge.s32.totalorder %s31, 2
      %s33 = scalar_select %p32, 0, %s31
      %s34 = ssub.s32 %s21, %s33
      %p35 = scmp.eq.s32.totalorder %s34, 0
      %s37 = sadd.s32 %s36, 1
      %s38 = scalar_select %p35, %s36, %s37
      %p41 = pneg %p35
      %p42 = scmp.eq.s32.totalorder %s14, 1
      %p43 = por %p41, %p42
      %p44 = scmp.ne.s32.totalorder %s36, %s39
      %p45 = scmp.eq.s32.totalorder %s14, 0
      %p46 = por %p44, %p45
      %p47 = scmp.ne.s32.totalorder %s36, %s39
      %p48 = scmp.eq.s32.totalorder %s19, 1
      %p49 = por %p47, %p48
      %p50 = scmp.ne.s32.totalorder %s39, %s40
      %p51 = scmp.eq.s32.totalorder %s19, 0
      %p52 = por %p50, %p51
      %p53 = scmp.ne.s32.totalorder %s39, %s40
      %p54 = scmp.eq.s32.totalorder %s20, 1
      %p55 = por %p53, %p54
      %p57 = scmp.ne.s32.totalorder %s40, %s56
      %p58 = scmp.eq.s32.totalorder %s20, 0
      %p59 = por %p57, %p58
      %s61 = sadd.s32 %s60, 1
      %p64 = scmp.eq.s32.totalorder %s14, 1
      %p65 = scmp.ne.s32.totalorder %s60, %s62
      %p66 = scmp.eq.s32.totalorder %s14, 0
      %p67 = por %p65, %p66
      %p68 = scmp.ne.s32.totalorder %s60, %s62
      %p69 = scmp.eq.s32.totalorder %s19, 1
      %p70 = por %p68, %p69
      %p71 = scmp.ne.s32.totalorder %s62, %s63
      %p72 = scmp.eq.s32.totalorder %s19, 0
      %p73 = por %p71, %p72
      %p74 = scmp.ne.s32.totalorder %s62, %s63
      %p75 = scmp.eq.s32.totalorder %s20, 1
      %p76 = por %p74, %p75
      %p78 = scmp.ne.s32.totalorder %s63, %s77
      %p79 = scmp.eq.s32.totalorder %s20, 0
      %p80 = por %p78, %p79
      %s82 = sadd.s32 %s81, 1
      %p85 = scmp.eq.s32.totalorder %s14, 1
      %p86 = scmp.ne.s32.totalorder %s81, %s83
      %p87 = scmp.eq.s32.totalorder %s14, 0
      %p88 = por %p86, %p87
      %p89 = scmp.ne.s32.totalorder %s81, %s83
      %p90 = scmp.eq.s32.totalorder %s19, 1
      %p91 = por %p89, %p90
      %p92 = scmp.ne.s32.totalorder %s83, %s84
      %p93 = scmp.eq.s32.totalorder %s19, 0
      %p94 = por %p92, %p93
      %p95 = scmp.ne.s32.totalorder %s83, %s84
      %p96 = scmp.eq.s32.totalorder %s20, 1
      %p97 = por %p95, %p96
      %p99 = scmp.ne.s32.totalorder %s84, %s98
      %p100 = scmp.eq.s32.totalorder %s20, 0
      %p101 = por %p99, %p100
      %s103 = sadd.s32 %s102, 1
      %p106 = scmp.eq.s32.totalorder %s14, 1
      %p107 = scmp.ne.s32.totalorder %s102, %s104
      %p108 = scmp.eq.s32.totalorder %s14, 0
      %p109 = por %p107, %p108
      %p110 = scmp.ne.s32.totalorder %s102, %s104
      %p111 = scmp.eq.s32.totalorder %s19, 1
      %p112 = por %p110, %p111
      %p113 = scmp.ne.s32.totalorder %s104, %s105
      %p114 = scmp.eq.s32.totalorder %s19, 0
      %p115 = por %p113, %p114
      %p116 = scmp.ne.s32.totalorder %s104, %s105
      %p117 = scmp.eq.s32.totalorder %s20, 1
      %p118 = por %p116, %p117
      %p120 = scmp.ne.s32.totalorder %s105, %s119
      %p121 = scmp.eq.s32.totalorder %s20, 0
      %p122 = por %p120, %p121
      %s123 = ssub.s32 %s21, %s33
      %s124 = ssub.s32 %s22, %s29
      %s125 = sor.u32 %s123, %s124
      %p126 = scmp.eq.s32.totalorder %s125, 0
      %s128 = sadd.s32 %s127, 1
      %s129 = scalar_select %p126, %s127, %s128
      %p132 = pneg %p126
      %p133 = scmp.eq.s32.totalorder %s14, 1
      %p134 = por %p132, %p133
      %p135 = scmp.ne.s32.totalorder %s127, %s130
      %p136 = scmp.eq.s32.totalorder %s14, 0
      %p137 = por %p135, %p136
      %p138 = scmp.ne.s32.totalorder %s127, %s130
      %p139 = scmp.eq.s32.totalorder %s19, 1
      %p140 = por %p138, %p139
      %p141 = scmp.ne.s32.totalorder %s130, %s131
      %p142 = scmp.eq.s32.totalorder %s19, 0
      %p143 = por %p141, %p142
      %p144 = scmp.ne.s32.totalorder %s130, %s131
      %p145 = scmp.eq.s32.totalorder %s20, 1
      %p146 = por %p144, %p145
      %p148 = scmp.ne.s32.totalorder %s131, %s147
      %p149 = scmp.eq.s32.totalorder %s20, 0
      %p150 = por %p148, %p149
      %p151 = scmp.le.s32.totalorder 1, %s14
      %p152 = scmp.lt.s32.totalorder %s14, 3
      %p153 = pnand %p151, %p152
      %p154 = pneg %p153
      // Predicated region
      $region9: #{tpu_custom_call.1} parent=5 // pred_check
        _
      $region10: #{tpu_custom_call.1} parent=5 // pred_check_branch
        %156 = sbr.rel (%p153) target = $region12
      $region11: #{tpu_custom_call.1} parent=5 // pred_region
        %s157 = ssub.s32 %s14, 1
        // Predicated region
        $region13: #{tpu_custom_call.1} parent=11 // pred_check
          %p158 = pneg %p73
        $region14: #{tpu_custom_call.1} parent=11 // pred_check_branch
          %160 = sbr.rel (%p158) target = $region16
        $region15: #{tpu_custom_call.1} parent=11 // pred_region
          _
        $region16: #{tpu_custom_call.1} parent=11 // pred_fallthru
          _
        // Predicated region
        $region17: #{tpu_custom_call.1} parent=11 // pred_check
          %p161 = pneg %p94
        $region18: #{tpu_custom_call.1} parent=11 // pred_check_branch
          %163 = sbr.rel (%p161) target = $region20
        $region19: #{tpu_custom_call.1} parent=11 // pred_region
          %s165 = ssub.s32 512, 512
          %166 = vsyncadd [#allocation3], %s165
          %s167 = sshll.u32 [#allocation2], 4
          %s168 = int_to_ptr.vmem [resolvable:$true] %s167
          %173 = dma.hbm_to_vmem [thread:$0]  %s2, 512, %s168, [#allocation3], 128, 128, 8
        $region20: #{tpu_custom_call.1} parent=11 // pred_fallthru
          _
        // Predicated region
        $region21: #{tpu_custom_call.1} parent=11 // pred_check
          %p174 = pneg %p115
        $region22: #{tpu_custom_call.1} parent=11 // pred_check_branch
          %176 = sbr.rel (%p174) target = $region24
        $region23: #{tpu_custom_call.1} parent=11 // pred_region
          _
        $region24: #{tpu_custom_call.1} parent=11 // pred_fallthru
          _
      $region12: #{tpu_custom_call.1} parent=5 // pred_fallthru
        _
      %p177 = scmp.lt.s32.totalorder %s14, 2
      // Predicated region
      $region25: #{tpu_custom_call.1} parent=5 // pred_check
        %p178 = pneg %p177
      $region26: #{tpu_custom_call.1} parent=5 // pred_check_branch
        %180 = sbr.rel (%p178) target = $region28
      $region27: #{tpu_custom_call.1} parent=5 // pred_region
        // Predicated region
        $region29: #{tpu_custom_call.1} parent=27 // pred_check
          %p181 = pneg %p46
        $region30: #{tpu_custom_call.1} parent=27 // pred_check_branch
          %183 = sbr.rel (%p181) target = $region32
        $region31: #{tpu_custom_call.1} parent=27 // pred_region
          %p184 = scmp.lt.s32.totalorder %s21, 1
          %s185 = scalar_select %p184, %s21, 1
          %s186 = smul.addr %s185, 2
          %s187 = smul.addr %s186, 8
          %s188 = scalar_lea.vmem %s0, %s187
        $region32: #{tpu_custom_call.1} parent=27 // pred_fallthru
          _
      $region28: #{tpu_custom_call.1} parent=5 // pred_fallthru
        _
      %p189 = scmp.le.s32.totalorder 1, %s14
      %p190 = scmp.lt.s32.totalorder %s14, 3
      %p191 = pnand %p189, %p190
      %p192 = pneg %p191
      // Predicated region
      $region33: #{tpu_custom_call.1} parent=5 // pred_check
        _
      $region34: #{tpu_custom_call.1} parent=5 // pred_check_branch
        %194 = sbr.rel (%p191) target = $region36
      $region35: #{tpu_custom_call.1} parent=5 // pred_region
        %s195 = ssub.s32 %s14, 1
        // Predicated region
        $region37: #{tpu_custom_call.1} parent=35 // pred_check
          %p196 = pneg %p94
        $region38: #{tpu_custom_call.1} parent=35 // pred_check_branch
          %198 = sbr.rel (%p196) target = $region40
        $region39: #{tpu_custom_call.1} parent=35 // pred_region
          %199 = dma.done [#allocation3], 512
        $region40: #{tpu_custom_call.1} parent=35 // pred_fallthru
          _
        %p200 = scmp.lt.s32.totalorder %s23, 1
        %s201 = scalar_select %p200, %s23, 1
        %s202 = smul.addr %s201, 2
        %s203 = smul.addr %s202, 8
        %s204 = scalar_lea.vmem %s0, %s203
        %p205 = pneg %p52
        %p206 = pneg %p49
        %p207 = pneg %p73
        %p208 = pneg %p70
        %p209 = pneg %p94
        %p210 = pneg %p91
        %p211 = pneg %p115
        %p212 = pneg %p112
        %p213 = pneg %p143
        %p214 = pneg %p140
        %s215 = sand.u32 %s130, 1
        %s216 = scalar_lea.sflag [#allocation4], %s215
        %s217 = sand.u32 %s130, 1
        %s218 = smul.addr %s217, 8
        %s219 = scalar_lea.vmem [#allocation5], %s218
        %p220 = scmp.lt.s32.totalorder %s23, 1
        %s221 = scalar_select %p220, %s23, 1
        %s222 = smul.addr %s221, 2
        %s223 = smul.addr %s222, 8
        %s224 = scalar_lea.vmem %s0, %s223
        %s225 = smul.u32 %s24, 8
        %s226 = sadd.s32 %s225, 1
        %s227 = scalar_lea.vmem %s224, %s226
        %v228 = vld [vmem:[%s227] sm:$0xff]
        %v229 = vld [vmem:[%s224] sm:$0x1]
        %v230 = vld [vmem:[%s1] sm:$0xff]
        %v231 = vld [vmem:[%s1 + $0x8] sm:$0xff]
        %v232 = vld [vmem:[%s1 + $0x10] sm:$0xff]
        %v233 = vld [vmem:[%s1 + $0x18] sm:$0xff]
        %v234 = vld [vmem:[#allocation2] sm:$0xff]
        %v235 = vld [vmem:[#allocation2 + $0x8] sm:$0xff]
        %v236 = vld [vmem:[#allocation2 + $0x10] sm:$0xff]
        %v237 = vld [vmem:[#allocation2 + $0x18] sm:$0xff]
        %vm238 = vcmask 261120
        %v240 = vsel %vm238, %v229, 0
        %242 = vmatprep.subr.mxu0 0.0
        %243 = vmatpush1.msra.mxu0 %v234
        %244 = vmatprep.subr.mxu0 0.0
        %245 = vmatpush1.msra.mxu0 %v235
        %246 = vmatprep.subr.mxu0 0.0
        %247 = vmatpush1.msra.mxu0 %v236
        %248 = vmatprep.subr.mxu0 0.0
        %249 = vmatpush1.msra.mxu0 %v237
        %250 = vmatprep.subr.mxu0 0.0
        %251 = vmatpush1.msra.mxu0 0.0
        %252 = vmatprep.subr.mxu0 0.0
        %253 = vmatpush1.msra.mxu0 0.0
        %254 = vmatprep.subr.mxu0 0.0
        %255 = vmatpush1.msra.mxu0 0.0
        %256 = vmatprep.subr.mxu0 0.0
        %257 = vmatpush1.msra.mxu0 0.0
        %258 = vmatprep.subr.mxu0 0.0
        %259 = vmatpush1.msra.mxu0 0.0
        %260 = vmatprep.subr.mxu0 0.0
        %261 = vmatpush1.msra.mxu0 0.0
        %262 = vmatprep.subr.mxu0 0.0
        %263 = vmatpush1.msra.mxu0 0.0
        %264 = vmatprep.subr.mxu0 0.0
        %265 = vmatpush1.msra.mxu0 0.0
        %266 = vmatprep.subr.mxu0 0.0
        %267 = vmatpush1.msra.mxu0 0.0
        %268 = vmatprep.subr.mxu0 0.0
        %269 = vmatpush1.msra.mxu0 0.0
        %270 = vmatprep.subr.mxu0 0.0
        %271 = vmatpush1.msra.mxu0 0.0
        %272 = vmatprep.subr.mxu0 0.0
        %273 = vmatpush1.msra.mxu0 0.0
        %274 = vmatprep.subr.mxu0 0.0
        %275 = vmatpush1.msra.mxu0 0.0
        %276 = vmatprep.subr.mxu0 0.0
        %277 = vmatpush1.msra.mxu0 0.0
        %278 = vmatprep.subr.mxu0 0.0
        %279 = vmatpush1.msra.mxu0 0.0
        %280 = vmatprep.subr.mxu0 0.0
        %281 = vmatpush1.msra.mxu0 0.0
        %282 = vmatprep.subr.mxu0 0.0
        %283 = vmatpush1.msra.mxu0 0.0
        %284 = vmatprep.subr.mxu0 0.0
        %285 = vmatpush1.msra.mxu0 0.0
        %286 = vmatprep.subr.mxu0 0.0
        %287 = vmatpush1.msra.mxu0 0.0
        %288 = vmatprep.subr.mxu0 0.0
        %289 = vmatpush1.msra.mxu0 0.0
        %290 = vmatprep.subr.mxu0 0.0
        %291 = vmatpush1.msra.mxu0 0.0
        %292 = vmatprep.subr.mxu0 0.0
        %293 = vmatpush1.msra.mxu0 0.0
        %294 = vmatprep.subr.mxu0 0.0
        %295 = vmatpush1.msra.mxu0 0.0
        %296 = vmatprep.subr.mxu0 0.0
        %297 = vmatpush1.msra.mxu0 0.0
        %298 = vmatprep.subr.mxu0 0.0
        %299 = vmatpush1.msra.mxu0 0.0
        %300 = vmatprep.subr.mxu0 0.0
        %301 = vmatpush1.msra.mxu0 0.0
        %302 = vmatprep.subr.mxu0 0.0
        %303 = vmatpush1.msra.mxu0 0.0
        %304 = vmatprep.subr.mxu0 0.0
        %305 = vmatpush1.msra.mxu0 0.0
        %306 = vmatprep.mubr.f32.mxu0 0.0
        %307 = vmatmul.mubr.f32.gmra.mrb[0].mxu0 %v240
        %v308 = vpop.f32.mrb[0].mxu0
        %v309 = vadd.f32 0.0, %v308
        %v310 = vpop.f32.mrb[0].mxu0
        %311 = vdwg.mxu0
        %v312 = vlaneseq
        %v313 = vshrl.u32 %v312, 7
        %v314 = vsub.s32 0, %v313
        %v315 = vrot.slane %v309, %v314
        %v317 = vsel %vm238, %v228, 0
        %319 = vmatprep.subr.mxu0 0.0
        %320 = vmatpush1.msra.mxu0 %v230
        %321 = vmatprep.subr.mxu0 0.0
        %322 = vmatpush1.msra.mxu0 %v231
        %323 = vmatprep.subr.mxu0 0.0
        %324 = vmatpush1.msra.mxu0 %v232
        %325 = vmatprep.subr.mxu0 0.0
        %326 = vmatpush1.msra.mxu0 %v233
        %327 = vmatprep.subr.mxu0 0.0
        %328 = vmatpush1.msra.mxu0 0.0
        %329 = vmatprep.subr.mxu0 0.0
        %330 = vmatpush1.msra.mxu0 0.0
        %331 = vmatprep.subr.mxu0 0.0
        %332 = vmatpush1.msra.mxu0 0.0
        %333 = vmatprep.subr.mxu0 0.0
        %334 = vmatpush1.msra.mxu0 0.0
        %335 = vmatprep.subr.mxu0 0.0
        %336 = vmatpush1.msra.mxu0 0.0
        %337 = vmatprep.subr.mxu0 0.0
        %338 = vmatpush1.msra.mxu0 0.0
        %339 = vmatprep.subr.mxu0 0.0
        %340 = vmatpush1.msra.mxu0 0.0
        %341 = vmatprep.subr.mxu0 0.0
        %342 = vmatpush1.msra.mxu0 0.0
        %343 = vmatprep.subr.mxu0 0.0
        %344 = vmatpush1.msra.mxu0 0.0
        %345 = vmatprep.subr.mxu0 0.0
        %346 = vmatpush1.msra.mxu0 0.0
        %347 = vmatprep.subr.mxu0 0.0
        %348 = vmatpush1.msra.mxu0 0.0
        %349 = vmatprep.subr.mxu0 0.0
        %350 = vmatpush1.msra.mxu0 0.0
        %351 = vmatprep.subr.mxu0 0.0
        %352 = vmatpush1.msra.mxu0 0.0
        %353 = vmatprep.subr.mxu0 0.0
        %354 = vmatpush1.msra.mxu0 0.0
        %355 = vmatprep.subr.mxu0 0.0
        %356 = vmatpush1.msra.mxu0 0.0
        %357 = vmatprep.subr.mxu0 0.0
        %358 = vmatpush1.msra.mxu0 0.0
        %359 = vmatprep.subr.mxu0 0.0
        %360 = vmatpush1.msra.mxu0 0.0
        %361 = vmatprep.subr.mxu0 0.0
        %362 = vmatpush1.msra.mxu0 0.0
        %363 = vmatprep.subr.mxu0 0.0
        %364 = vmatpush1.msra.mxu0 0.0
        %365 = vmatprep.subr.mxu0 0.0
        %366 = vmatpush1.msra.mxu0 0.0
        %367 = vmatprep.subr.mxu0 0.0
        %368 = vmatpush1.msra.mxu0 0.0
        %369 = vmatprep.subr.mxu0 0.0
        %370 = vmatpush1.msra.mxu0 0.0
        %371 = vmatprep.subr.mxu0 0.0
        %372 = vmatpush1.msra.mxu0 0.0
        %373 = vmatprep.subr.mxu0 0.0
        %374 = vmatpush1.msra.mxu0 0.0
        %375 = vmatprep.subr.mxu0 0.0
        %376 = vmatpush1.msra.mxu0 0.0
        %377 = vmatprep.subr.mxu0 0.0
        %378 = vmatpush1.msra.mxu0 0.0
        %379 = vmatprep.subr.mxu0 0.0
        %380 = vmatpush1.msra.mxu0 0.0
        %381 = vmatprep.subr.mxu0 0.0
        %382 = vmatpush1.msra.mxu0 0.0
        %383 = vmatprep.mubr.f32.mxu0 0.0
        %384 = vmatmul.mubr.f32.gmra.mrb[0].mxu0 %v317
        %v385 = vpop.f32.mrb[0].mxu0
        %v386 = vadd.f32 %v315, %v385
        %v387 = vpop.f32.mrb[0].mxu0
        %388 = vdwg.mxu0
        %v389 = vld [vmem:[%s3] sm:$0x1]
        %v391 = vlaneseq
        %v392 = vshrl.u32 %v391, 7
        %v393 = vsub.s32 0, %v392
        %v394 = vrot.slane %v389, %v393
        %v396 = vadd.f32 %v386, %v394
        %v397 = vmul.f32 %v396, 0.5
        %v398 = vmul.f32 %v396, 0.70710677
        %v399 = vand.u32 2147483647, %v398
        %v400 = vmul.f32 %v399, 0.3275911
        %v401 = vadd.f32 %v400, 1.0
        %v402 = vrcp.pop %v401
        %v403 = vmul.f32 1.0, %v402
        %v404 = vmul.f32 %v403, 1.0614054
        %v405 = vadd.f32 %v404, -1.4531521
        %v406 = vmul.f32 %v405, %v403
        %v407 = vadd.f32 %v406, 1.4214138
        %v408 = vmul.f32 %v407, %v403
        %v409 = vadd.f32 %v408, -0.28449672
        %v410 = vmul.f32 %v409, %v403
        %v411 = vadd.f32 %v410, 0.2548296
        %v412 = vmul.f32 %v411, %v403
        %v413 = vsub.f32 0.0, %v399
        %v414 = vmul.f32 %v413, %v399
        %v415 = vmul.f32 %v414, 1.442695
        %v416 = vpow.pop %v415
        %v417 = vmul.f32 %v412, %v416
        %v418 = vsub.f32 1.0, %v417
        %vm419 = vcmp.ge.f32.partialorder %v398, 0.0
        %v420 = vsub.f32 0.0, %v418
        %v421 = vsel %vm419, %v418, %v420
        %v422 = vadd.f32 %v421, 1.0
        %v423 = vmul.f32 %v397, %v422
        %424 = vst.msk [vmem:[%s219] sm:$0xff] %vm238, %v423
        %s425 = sand.u32 %s130, 1
        %s426 = scalar_lea.sflag [#allocation4], %s425
        %s427 = sand.u32 %s130, 1
        %s428 = smul.addr %s427, 8
        %s429 = scalar_lea.vmem [#allocation5], %s428
        // Predicated region
        $region41: #{tpu_custom_call.1} parent=35 // pred_check
          %p430 = pneg %p140
        $region42: #{tpu_custom_call.1} parent=35 // pred_check_branch
          %432 = sbr.rel (%p430) target = $region44
        $region43: #{tpu_custom_call.1} parent=35 // pred_region
          %s434 = ssub.s32 128, 128
          %435 = vsyncadd %s426, %s434
          %s436 = sadd.s32 %s24, %s23
          %s437 = smul.addr %s436, 128
          %s438 = scalar_lea.hbm %s4, %s437
          %s440 = sshll.u32 %s429, 4
          %s441 = int_to_ptr.vmem [resolvable:$true] %s440
          %443 = dma.vmem_to_hbm [thread:$0]  %s441, 128, %s438, %s426
        $region44: #{tpu_custom_call.1} parent=35 // pred_fallthru
          _
      $region36: #{tpu_custom_call.1} parent=5 // pred_fallthru
        _
      %p444 = scmp.le.s32.totalorder 2, %s14
      // Predicated region
      $region45: #{tpu_custom_call.1} parent=5 // pred_check
        %p445 = pneg %p444
      $region46: #{tpu_custom_call.1} parent=5 // pred_check_branch
        %447 = sbr.rel (%p445) target = $region48
      $region47: #{tpu_custom_call.1} parent=5 // pred_region
        %s448 = ssub.s32 %s14, 2
        // Predicated region
        $region49: #{tpu_custom_call.1} parent=47 // pred_check
          %p449 = pneg %p146
        $region50: #{tpu_custom_call.1} parent=47 // pred_check_branch
          %451 = sbr.rel (%p449) target = $region52
        $region51: #{tpu_custom_call.1} parent=47 // pred_region
          %s452 = sand.u32 %s131, 1
          %s453 = scalar_lea.sflag [#allocation4], %s452
          %s454 = sand.u32 %s131, 1
          %s455 = smul.addr %s454, 8
          %s456 = scalar_lea.vmem [#allocation5], %s455
          %457 = dma.done %s453, 128
        $region52: #{tpu_custom_call.1} parent=47 // pred_fallthru
          _
      $region48: #{tpu_custom_call.1} parent=5 // pred_fallthru
        _
    $region6: #{tpu_custom_call.1} parent=1 // loop_footer
      %s18 = sadd.s32 1, %s14
    $region7: #{tpu_custom_call.1} parent=1 // loop_footer_branch
      %13 = sbr.rel target = $region3
    $region8: #{tpu_custom_call.1} parent=1 // loop_exit
      _
    %458 = vsyncpa [#allocation3], 1
    %s459 = scalar_lea.sflag [#allocation3], 1
    %460 = vsyncpa %s459, 1
    %461 = vsyncpa [#allocation4], 1
    %s462 = scalar_lea.sflag [#allocation4], 1
    %463 = vsyncpa %s462, 1

</llo_original>
